<compile_context>
chip_gen: v6e
topology: v6e:2x2x1
jax: 0.10.0
libtpu: 0.0.40
codegen_flags: <defaults>
</compile_context>

<pallas_src>
import jax
import jax.numpy as jnp
from jax.experimental import pallas as pl
from jax.experimental.pallas import tpu as pltpu


def _round_up(n, m):
    return ((n + m - 1) // m) * m


def _ensemble_kernel(x_ref, wf_ref, bf_ref, out_ref):
    """Fused ensemble forward: out = x @ W_fused + b_fused.

    x_ref   : (TB, H)  activations for this batch tile (bf16 or f32)
    wf_ref  : (H, P)   fused weight = stacked head weights @ dense weight^T
    bf_ref  : (1, P)   fused bias (f32)
    out_ref : (TB, P)  output logits (f32)
    """
    acc = jnp.dot(x_ref[...], wf_ref[...], preferred_element_type=jnp.float32)
    out_ref[...] = (acc + bf_ref[...]).astype(out_ref.dtype)


def _pick_tile_and_vmem(B, H, in_bytes, out_cols, out_bytes):
    """Generation-aware batch-tile size and scoped-VMEM limit."""
    try:
        vmem_cap = pltpu.get_tpu_info().vmem_capacity_bytes
    except Exception:
        vmem_cap = 64 * 1024 * 1024  # conservative default (v7x per-core VMEM)
    # Leave headroom under physical capacity: ~48 MiB on v7x, 96 MiB on v5e/v6e.
    vmem_limit = int(min(vmem_cap * 3 // 4, 96 * 1024 * 1024))

    # Double-buffered (TB, H) input block + (TB, P) output block per grid step.
    per_row = 2 * (H * in_bytes + out_cols * out_bytes)
    tb_cap = max(8, (vmem_limit // 2) // per_row // 8 * 8)
    # Target a few MiB per input block so the ~0.35us per-step overhead amortizes.
    target_rows = max(8, (4 * 1024 * 1024) // max(1, H * in_bytes))
    tb = min(_round_up(B, 8), _round_up(target_rows, 8), tb_cap)
    # Keep >= 2 grid steps when B allows, so the "parallel" batch axis can feed
    # both TensorCores on v7x.
    if B > 8 and pl.cdiv(B, tb) < 2:
        tb = max(8, _round_up(pl.cdiv(B, 2), 8))
    return tb, vmem_limit


def apc_ensembler_prepare(model_w, model_b, dense_w_t, dense_b,
                          *, compute_dtype=jnp.bfloat16):
    """One-time weight restructuring + algebraic fold (hoisted out of forward).

    model_w   : (N, H, P)  per-sub-model head weights (stand-ins for models[i])
    model_b   : (N, 1, P)  per-sub-model head biases
    dense_w_t : (N*P, P)   self.dense weight, transposed (Linear.weight.T)
    dense_b   : (1, P)     self.dense bias
    Returns (w_fused (H, P) in compute_dtype, b_fused (1, P) in f32).
    """
    N, H, P = model_w.shape
    NP = N * P
    assert dense_w_t.shape == (NP, P)
    f32 = jnp.float32
    # (N, H, P) -> (H, N*P); column order matches torch.cat(logits_i, dim=-1).
    wm_all = jnp.transpose(model_w, (1, 0, 2)).reshape(H, NP).astype(f32)
    bm_all = model_b.reshape(1, NP).astype(f32)
    # Fold self.dense into the heads (exact: heads -> cat -> dense is linear).
    w_fused = (wm_all @ dense_w_t.astype(f32)).astype(compute_dtype)   # (H, P)
    b_fused = bm_all @ dense_w_t.astype(f32) + dense_b.astype(f32)     # (1, P)
    return w_fused, b_fused


def apc_ensembler_forward(x, w_fused, b_fused, *, tb=None):
    """Returns {'logits': (B, P) f32, 'loss': scalar f32} like APCEnsembler."""
    B, H = x.shape
    H2, P = w_fused.shape
    assert H == H2 and b_fused.shape == (1, P)
    x = x.astype(w_fused.dtype)  # no-op when the caller already feeds bf16

    in_bytes = jnp.dtype(x.dtype).itemsize
    out_dtype = jnp.float32
    auto_tb, vmem_limit = _pick_tile_and_vmem(
        B, H, in_bytes, P, jnp.dtype(out_dtype).itemsize)
    if tb is None:
        tb = auto_tb

    grid = (pl.cdiv(B, tb),)   # ragged last batch block is masked by Pallas
    # Weight/bias blocks are tiny (H*P and P elements); double-buffering them
    # costs < 1 KiB here, so we keep the default pipelining for them.
    logits = pl.pallas_call(
        _ensemble_kernel,
        out_shape=jax.ShapeDtypeStruct((B, P), out_dtype),
        grid=grid,
        in_specs=[
            pl.BlockSpec((tb, H), lambda i: (i, 0)),   # activations: batch-tiled
            pl.BlockSpec((H, P), lambda i: (0, 0)),    # fused weight: resident
            pl.BlockSpec((1, P), lambda i: (0, 0)),    # fused bias:   resident
        ],
        out_specs=pl.BlockSpec((tb, P), lambda i: (i, 0)),
        compiler_params=pltpu.CompilerParams(
            dimension_semantics=("parallel",),  # shard batch steps across v7x TCs
            vmem_limit_bytes=vmem_limit,
        ),
    )(x, w_fused, b_fused)

    # forward(): loss starts at torch.tensor(0.0); synthetic heads emit no loss.
    # TODO(synk): real BERT/LCF/GloVe sub-model forwards, their losses, dataset/tokenizer loading, and the 'mean' ensemble branch have no Pallas equivalent here.
    loss = jnp.zeros((), jnp.float32)
    return {"logits": logits, "loss": loss}


if __name__ == "__main__":
    # Small shapes consistent with the module:
    #   batch=8, hidden=32, polarities_dim=3, num ensemble models=3
    B, H, P, N = 8, 32, 3, 3

    key = jax.random.PRNGKey(0)
    k_x, k_wm, k_bm, k_wd, k_bd = jax.random.split(key, 5)

    x = jax.random.normal(k_x, (B, H), dtype=jnp.float32)
    # Synthetic per-sub-model linear heads (stand-ins for models[i](inputs)).
    model_w = jax.random.normal(k_wm, (N, H, P), dtype=jnp.float32) * 0.05
    model_b = jax.random.normal(k_bm, (N, 1, P), dtype=jnp.float32) * 0.05
    # self.dense = nn.Linear(P * N, P); stored transposed for logits @ W^T.
    dense_w_t = jax.random.normal(k_wd, (N * P, P), dtype=jnp.float32) * 0.1
    dense_b = jax.random.normal(k_bd, (1, P), dtype=jnp.float32) * 0.1

    # One-time weight fold (init-time work, not per-call).
    w_fused, b_fused = apc_ensembler_prepare(model_w, model_b, dense_w_t, dense_b)

    # Feed bf16 activations (halves input DMA bytes; f32 accumulation inside).
    out = apc_ensembler_forward(x.astype(jnp.bfloat16), w_fused, b_fused)
    jax.block_until_ready(out["logits"])
    jax.block_until_ready(out["loss"])

    # Pure-JAX f32 reference of the original math (heads -> cat -> dense).
    per_model = [x @ model_w[i] + model_b[i] for i in range(N)]
    cat = jnp.concatenate(per_model, axis=-1)
    ref = cat @ dense_w_t + dense_b

    assert out["logits"].shape == (B, P)
    assert out["loss"].shape == ()
    assert jnp.allclose(out["logits"], ref, atol=2e-2, rtol=2e-2), (
        jnp.max(jnp.abs(out["logits"] - ref)))
    print("KERNEL_OK")
</pallas_src>

<mosaic_0001>
module attributes {stable_mosaic.version = 11 : i64} {
  func.func @_ensemble_kernel(%arg0: i32, %arg1: memref<8x32xbf16, #tpu.memory_space<vmem>>, %arg2: memref<32x3xbf16, #tpu.memory_space<vmem>>, %arg3: memref<1x3xf32, #tpu.memory_space<vmem>>, %arg4: memref<8x3xf32, #tpu.memory_space<vmem>>) attributes {dimension_semantics = [#tpu.dimension_semantics<parallel>], iteration_bounds = array<i64: 1>, scalar_prefetch = 0 : i64, scratch_operands = 0 : i64, tpu.core_type = #tpu.core_type<tc>, window_params = [{transform_indices = @transform_0, window_bounds = array<i64: 8, 32>}, {pipeline_mode = #tpu.pipeline_mode<synchronous>, transform_indices = @transform_1, window_bounds = array<i64: 32, 3>}, {pipeline_mode = #tpu.pipeline_mode<synchronous>, transform_indices = @transform_2, window_bounds = array<i64: 1, 3>}, {transform_indices = @transform_3, window_bounds = array<i64: 8, 3>}]} {
    %c0 = arith.constant 0 : index
    %c0_0 = arith.constant 0 : index
    %0 = vector.load %arg1[%c0, %c0_0] : memref<8x32xbf16, #tpu.memory_space<vmem>>, vector<8x32xbf16>
    %c0_1 = arith.constant 0 : index
    %c0_2 = arith.constant 0 : index
    %1 = vector.load %arg2[%c0_1, %c0_2] : memref<32x3xbf16, #tpu.memory_space<vmem>>, vector<32x3xbf16>
    %cst = arith.constant dense<0.000000e+00> : vector<8x3xf32>
    %2 = tpu.matmul %0, %1, %cst {dimension_numbers = #tpu.dot_dimension_numbers<[1], [0], [0], [1], [0, 0, 1, 1], [], []>} : vector<8x32xbf16>, vector<32x3xbf16>, vector<8x3xf32> -> vector<8x3xf32>
    %c0_3 = arith.constant 0 : index
    %c0_4 = arith.constant 0 : index
    %3 = vector.load %arg3[%c0_3, %c0_4] : memref<1x3xf32, #tpu.memory_space<vmem>>, vector<1x3xf32>
    %4 = vector.broadcast %3 : vector<1x3xf32> to vector<8x3xf32>
    %5 = arith.addf %2, %4 : vector<8x3xf32>
    %c0_5 = arith.constant 0 : index
    %c0_6 = arith.constant 0 : index
    %6 = vector.load %arg4[%c0_5, %c0_6] : memref<8x3xf32, #tpu.memory_space<vmem>>, vector<8x3xf32>
    tpu.vector_store %arg4[%c0_5, %c0_6], %5 {strides = array<i32>} : memref<8x3xf32, #tpu.memory_space<vmem>>, vector<8x3xf32>,
    return
  }
  func.func @transform_0(%arg0: i32) -> (i32, i32) {
    %c0_i32 = arith.constant 0 : i32
    %c0_i32_0 = arith.constant 0 : i32
    return %arg0, %c0_i32 : i32, i32
  }
  func.func @transform_1(%arg0: i32) -> (i32, i32) {
    %c0_i32 = arith.constant 0 : i32
    %c0_i32_0 = arith.constant 0 : i32
    %c0_i32_1 = arith.constant 0 : i32
    return %c0_i32, %c0_i32_0 : i32, i32
  }
  func.func @transform_2(%arg0: i32) -> (i32, i32) {
    %c0_i32 = arith.constant 0 : i32
    %c0_i32_0 = arith.constant 0 : i32
    %c0_i32_1 = arith.constant 0 : i32
    return %c0_i32, %c0_i32_0 : i32, i32
  }
  func.func @transform_3(%arg0: i32) -> (i32, i32) {
    %c0_i32 = arith.constant 0 : i32
    %c0_i32_0 = arith.constant 0 : i32
    return %arg0, %c0_i32 : i32, i32
  }
}

</mosaic_0001>

<llo_original>
// kernel: tpu_custom_call.1
$region0: #{tpu_custom_call.1}
  #allocation0 [shape = 'u32[]', space=smem, size = 0x4, offset = 0x4, fixed_abs, tag = 'smem constant byte address 0x4 - core index']
  #allocation1 [shape = 'u32[144,128]{1,0:T(1,128)}', space=vmem, size = 0x12000, scoped, tag = 'internal scratch']
  %s0 = inlined_call_operand.vmem [shape: bf16[8,32], index: 0, kind: input, shape index: {}]
  %s1 = inlined_call_operand.vmem [shape: bf16[32,3], index: 1, kind: input, shape index: {}]
  %s2 = inlined_call_operand.vmem [shape: f32[1,3], index: 2, kind: input, shape index: {}]
  %s3 = inlined_call_operand.vmem [shape: f32[8,3], index: 3, kind: output, shape index: {}]
  %s4 = sld [smem:[#allocation0]]
  $region22: #{tpu_custom_call.1} parent=0
    _
  %s6 = ssub.s32 1, %s4
  %s7 = scalar_select 0, %s6, %s4
  // Predicated region
  $region2: #{tpu_custom_call.1} parent=0 // pred_check
    _
  $region3: #{tpu_custom_call.1} parent=0 // pred_check_branch
    %9 = sbr.rel (0) target = $region5
  $region4: #{tpu_custom_call.1} parent=0 // pred_region
    _
  $region5: #{tpu_custom_call.1} parent=0 // pred_fallthru
    _
  // Predicated region
  $region6: #{tpu_custom_call.1} parent=0 // pred_check
    _
  $region7: #{tpu_custom_call.1} parent=0 // pred_check_branch
    %11 = sbr.rel (0) target = $region9
  $region8: #{tpu_custom_call.1} parent=0 // pred_region
    _
  $region9: #{tpu_custom_call.1} parent=0 // pred_fallthru
    _
  // Predicated region
  $region10: #{tpu_custom_call.1} parent=0 // pred_check
    _
  $region11: #{tpu_custom_call.1} parent=0 // pred_check_branch
    %13 = sbr.rel (0) target = $region13
  $region12: #{tpu_custom_call.1} parent=0 // pred_region
    _
  $region13: #{tpu_custom_call.1} parent=0 // pred_fallthru
    _
  %v15 = vld [vmem:[%s0] sm:$0xf]
  %v16 = vld [vmem:[%s1] sm:$0xf]
  %v17 = vld [vmem:[%s1 + $0x4] sm:$0xf]
  %v18 = vld [vmem:[%s1 + $0x8] sm:$0xf]
  %v19 = vld [vmem:[%s1 + $0xc] sm:$0xf]
  %v20 = vld [vmem:[%s2] sm:$0x1]
  %v22 = vlaneseq
  %v23 = vshrl.u32 %v22, 7
  %v24 = vsub.s32 0, %v23
  %v25 = vrot.slane %v20, %v24
  %v31 = vunpack.c.l.b16 %v16
  %v32 = vunpack.c.l.b16 %v17
  %v33 = vunpack.c.l.b16 %v18
  %v34 = vunpack.c.l.b16 %v19
  %v35 = vpack.c.b16 %v32, %v31
  %v36 = vpack.c.b16 %v34, %v33
  %vm39 = vcmask 261120
  %v41 = vsel %vm39, %v15, 0
  %43 = vmatprep.subr.bf16.mxu0 0
  %44 = vmatpush1.bf16.msra.mxu0 0
  %45 = vmatprep.subr.bf16.mxu0 0
  %46 = vmatpush1.bf16.msra.mxu0 0
  %47 = vmatprep.subr.bf16.mxu0 0
  %48 = vmatpush1.bf16.msra.mxu0 0
  %49 = vmatprep.subr.bf16.mxu0 0
  %50 = vmatpush1.bf16.msra.mxu0 0
  %51 = vmatprep.subr.bf16.mxu0 0
  %52 = vmatpush1.bf16.msra.mxu0 0
  %53 = vmatprep.subr.bf16.mxu0 0
  %54 = vmatpush1.bf16.msra.mxu0 0
  %55 = vmatprep.subr.bf16.mxu0 0
  %56 = vmatpush1.bf16.msra.mxu0 %v36
  %57 = vmatprep.subr.bf16.mxu0 0
  %58 = vmatpush1.bf16.msra.mxu0 %v35
  %59 = vmatprep.subr.bf16.mxu0 0
  %60 = vmatpush2.bf16.msra.mxu0 0
  %61 = vmatprep.subr.bf16.mxu0 0
  %62 = vmatpush2.bf16.msra.mxu0 0
  %63 = vmatprep.subr.bf16.mxu0 0
  %64 = vmatpush2.bf16.msra.mxu0 0
  %65 = vmatprep.subr.bf16.mxu0 0
  %66 = vmatpush2.bf16.msra.mxu0 0
  %67 = vmatprep.subr.bf16.mxu0 0
  %68 = vmatpush2.bf16.msra.mxu0 0
  %69 = vmatprep.subr.bf16.mxu0 0
  %70 = vmatpush2.bf16.msra.mxu0 0
  %71 = vmatprep.subr.bf16.mxu0 0
  %72 = vmatpush2.bf16.msra.mxu0 0
  %73 = vmatprep.subr.bf16.mxu0 0
  %74 = vmatpush2.bf16.msra.mxu0 0
  %75 = vmatprep.mubr.bf16.mxu0 0
  %76 = vmatmul.mubr.bf16.gmra.mxu0 %v41
  %v77 = vpop.f32.mrf.mxu0
  %v78 = vadd.f32 %v25, %v77
  %v79 = vpop.f32.mrf.mxu0
  %v80 = vpop.f32.mrf.mxu0
  %v81 = vpop.f32.mrf.mxu0
  %82 = vdwg.mxu0
  %vm83 = vcmask 23552
  %84 = vst.msk [vmem:[%s3] sm:$0xff] %vm83, %v78
  // Predicated region
  $region14: #{tpu_custom_call.1} parent=0 // pred_check
    _
  $region15: #{tpu_custom_call.1} parent=0 // pred_check_branch
    %86 = sbr.rel (0) target = $region17
  $region16: #{tpu_custom_call.1} parent=0 // pred_region
    _
  $region17: #{tpu_custom_call.1} parent=0 // pred_fallthru
    _
  // Predicated region
  $region18: #{tpu_custom_call.1} parent=0 // pred_check
    _
  $region19: #{tpu_custom_call.1} parent=0 // pred_check_branch
    %88 = sbr.rel (0) target = $region21
  $region20: #{tpu_custom_call.1} parent=0 // pred_region
    _
  $region21: #{tpu_custom_call.1} parent=0 // pred_fallthru
    _

</llo_original>
